<compile_context>
chip_gen: v7x
topology: tpu7x:2x2x1
jax: 0.10.0
libtpu: 0.0.40
codegen_flags: <defaults>
</compile_context>

<pallas_src>
import jax
import jax.numpy as jnp
from jax.experimental import pallas as pl
from jax.experimental.pallas import tpu as pltpu

IN_FEATURES = 20
HIDDEN = 256
OUT_FEATURES = 20

LANE = 128          # TPU lane width: pad the 20-wide dims to this
SUBLANE = 8
IN_PAD = LANE       # contraction dim 20 -> 128 (zero-padded, exact)
OUT_PAD = LANE      # output dim 20 -> 128 (zero-padded, exact)
BATCH_TILE = 512    # batch tile for the streamed case (multiple of 8)


def newnet_kernel(x_ref, w1_ref, b1_ref, w2_ref, b2_ref, o_ref):
    """o = relu(x @ W1 + b1) @ W2 + b2  (all operands already lane-padded)."""
    h = jnp.dot(x_ref[...], w1_ref[...], preferred_element_type=jnp.float32)
    h = jnp.maximum(h + b1_ref[...], 0.0)            # (1, HIDDEN) broadcasts over rows
    y = jnp.dot(h, w2_ref[...], preferred_element_type=jnp.float32)
    o_ref[...] = (y + b2_ref[...]).astype(o_ref.dtype)


def _pad2d(a, rows, cols):
    return jnp.pad(a, ((0, rows - a.shape[0]), (0, cols - a.shape[1])))


def _round_up(n, m):
    return ((n + m - 1) // m) * m


def newnet_forward(x, w1, b1, w2, b2):
    """x: (B, 20); w1: (20, 256); b1: (256,); w2: (256, 20); b2: (20,)."""
    B = x.shape[0]
    dtype = x.dtype

    # Lane-dense padding of the parameters (cheap; fuses under jit).
    w1p = _pad2d(w1.astype(dtype), IN_PAD, HIDDEN)
    b1p = jnp.reshape(b1.astype(dtype), (1, HIDDEN))
    w2p = _pad2d(w2.astype(dtype), HIDDEN, OUT_PAD)
    b2p = _pad2d(jnp.reshape(b2.astype(dtype), (1, OUT_FEATURES)), 1, OUT_PAD)

    if B <= BATCH_TILE:
        # Tiny case: single whole-array VMEM blocks, no grid, no pipeline.
        bp = _round_up(B, SUBLANE)
        xp = _pad2d(x, bp, IN_PAD)
        flops = 2 * bp * (IN_PAD * HIDDEN + HIDDEN * OUT_PAD)
        bytes_accessed = 4 * (xp.size + w1p.size + b1p.size + w2p.size
                              + b2p.size + bp * OUT_PAD)
        yp = pl.pallas_call(
            newnet_kernel,
            out_shape=jax.ShapeDtypeStruct((bp, OUT_PAD), dtype),
            in_specs=[pl.BlockSpec(memory_space=pltpu.MemorySpace.VMEM)] * 5,
            out_specs=pl.BlockSpec(memory_space=pltpu.MemorySpace.VMEM),
            cost_estimate=pl.CostEstimate(flops=flops, transcendentals=0,
                                          bytes_accessed=bytes_accessed),
        )(xp, w1p, b1p, w2p, b2p)
        return yp[:B, :OUT_FEATURES]

    # Batched case: tile only the batch axis; weights/biases use constant
    # index_maps so they stay pinned in VMEM (DMA'd exactly once).
    bp = _round_up(B, BATCH_TILE)
    xp = _pad2d(x, bp, IN_PAD)
    grid = (bp // BATCH_TILE,)
    flops = 2 * bp * (IN_PAD * HIDDEN + HIDDEN * OUT_PAD)
    bytes_accessed = 4 * (xp.size + w1p.size + b1p.size + w2p.size
                          + b2p.size + bp * OUT_PAD)
    yp = pl.pallas_call(
        newnet_kernel,
        out_shape=jax.ShapeDtypeStruct((bp, OUT_PAD), dtype),
        grid=grid,
        in_specs=[
            pl.BlockSpec((BATCH_TILE, IN_PAD), lambda i: (i, 0)),   # streamed batch
            pl.BlockSpec((IN_PAD, HIDDEN), lambda i: (0, 0)),       # pinned W1
            pl.BlockSpec((1, HIDDEN), lambda i: (0, 0)),            # pinned b1
            pl.BlockSpec((HIDDEN, OUT_PAD), lambda i: (0, 0)),      # pinned W2
            pl.BlockSpec((1, OUT_PAD), lambda i: (0, 0)),           # pinned b2
        ],
        out_specs=pl.BlockSpec((BATCH_TILE, OUT_PAD), lambda i: (i, 0)),
        compiler_params=pltpu.CompilerParams(
            dimension_semantics=("parallel",)),                     # megacore on v7x
        cost_estimate=pl.CostEstimate(flops=flops, transcendentals=0,
                                      bytes_accessed=bytes_accessed),
    )(xp, w1p, b1p, w2p, b2p)
    return yp[:B, :OUT_FEATURES]


if __name__ == "__main__":
    key = jax.random.PRNGKey(0)
    k_x, k_w1, k_b1, k_w2, k_b2, k_xb = jax.random.split(key, 6)

    # Parameters: original_model.hidden = Linear(20, 256); new_layer = Linear(256, 20).
    # (Stored as (in, out) = PyTorch weight.T so the kernel computes x @ W + b.)
    w1 = jax.random.normal(k_w1, (IN_FEATURES, HIDDEN), dtype=jnp.float32) * 0.1
    b1 = jax.random.normal(k_b1, (HIDDEN,), dtype=jnp.float32) * 0.1
    w2 = jax.random.normal(k_w2, (HIDDEN, OUT_FEATURES), dtype=jnp.float32) * 0.1
    b2 = jax.random.normal(k_b2, (OUT_FEATURES,), dtype=jnp.float32) * 0.1

    def ref_fn(x):
        return jnp.maximum(x @ w1 + b1, 0.0) @ w2 + b2

    fwd = jax.jit(newnet_forward)

    # Small batch: exercises the no-grid whole-array VMEM path.
    x_small = jax.random.normal(k_x, (8, IN_FEATURES), dtype=jnp.float32)
    out_small = jax.block_until_ready(fwd(x_small, w1, b1, w2, b2))
    assert out_small.shape == (8, OUT_FEATURES)
    assert jnp.allclose(out_small, ref_fn(x_small), atol=1e-4, rtol=1e-4)

    # Larger batch: exercises the batch-tiled path (grid over batch, weights pinned).
    x_big = jax.random.normal(k_xb, (1024, IN_FEATURES), dtype=jnp.float32)
    out_big = jax.block_until_ready(fwd(x_big, w1, b1, w2, b2))
    assert out_big.shape == (1024, OUT_FEATURES)
    assert jnp.allclose(out_big, ref_fn(x_big), atol=1e-4, rtol=1e-4)

    print("KERNEL_OK")
</pallas_src>

<mosaic_0001>
module attributes {stable_mosaic.version = 11 : i64} {
  func.func @newnet_kernel(%arg0: memref<8x128xf32, #tpu.memory_space<vmem>>, %arg1: memref<128x256xf32, #tpu.memory_space<vmem>>, %arg2: memref<1x256xf32, #tpu.memory_space<vmem>>, %arg3: memref<256x128xf32, #tpu.memory_space<vmem>>, %arg4: memref<1x128xf32, #tpu.memory_space<vmem>>, %arg5: memref<8x128xf32, #tpu.memory_space<vmem>>) attributes {dimension_semantics = [], scalar_prefetch = 0 : i64, scratch_operands = 0 : i64, tpu.core_type = #tpu.core_type<tc>} {
    %c0 = arith.constant 0 : index
    %c0_0 = arith.constant 0 : index
    %0 = vector.load %arg0[%c0, %c0_0] : memref<8x128xf32, #tpu.memory_space<vmem>>, vector<8x128xf32>
    %c0_1 = arith.constant 0 : index
    %c0_2 = arith.constant 0 : index
    %1 = vector.load %arg1[%c0_1, %c0_2] : memref<128x256xf32, #tpu.memory_space<vmem>>, vector<128x256xf32>
    %cst = arith.constant dense<0.000000e+00> : vector<8x256xf32>
    %2 = tpu.matmul %0, %1, %cst {dimension_numbers = #tpu.dot_dimension_numbers<[1], [0], [0], [1], [0, 0, 1, 1], [], []>} : vector<8x128xf32>, vector<128x256xf32>, vector<8x256xf32> -> vector<8x256xf32>
    %c0_3 = arith.constant 0 : index
    %c0_4 = arith.constant 0 : index
    %3 = vector.load %arg2[%c0_3, %c0_4] : memref<1x256xf32, #tpu.memory_space<vmem>>, vector<1x256xf32>
    %4 = vector.broadcast %3 : vector<1x256xf32> to vector<8x256xf32>
    %5 = arith.addf %2, %4 : vector<8x256xf32>
    %cst_5 = arith.constant 0.000000e+00 : f32
    %6 = vector.broadcast %cst_5 : f32 to vector<8x256xf32>
    %7 = arith.maximumf %5, %6 : vector<8x256xf32>
    %c0_6 = arith.constant 0 : index
    %c0_7 = arith.constant 0 : index
    %8 = vector.load %arg3[%c0_6, %c0_7] : memref<256x128xf32, #tpu.memory_space<vmem>>, vector<256x128xf32>
    %cst_8 = arith.constant dense<0.000000e+00> : vector<8x128xf32>
    %9 = tpu.matmul %7, %8, %cst_8 {dimension_numbers = #tpu.dot_dimension_numbers<[1], [0], [0], [1], [0, 0, 1, 1], [], []>} : vector<8x256xf32>, vector<256x128xf32>, vector<8x128xf32> -> vector<8x128xf32>
    %c0_9 = arith.constant 0 : index
    %c0_10 = arith.constant 0 : index
    %10 = vector.load %arg4[%c0_9, %c0_10] : memref<1x128xf32, #tpu.memory_space<vmem>>, vector<1x128xf32>
    %11 = vector.broadcast %10 : vector<1x128xf32> to vector<8x128xf32>
    %12 = arith.addf %9, %11 : vector<8x128xf32>
    %c0_11 = arith.constant 0 : index
    %c0_12 = arith.constant 0 : index
    %13 = vector.load %arg5[%c0_11, %c0_12] : memref<8x128xf32, #tpu.memory_space<vmem>>, vector<8x128xf32>
    tpu.vector_store %arg5[%c0_11, %c0_12], %12 {strides = array<i32>} : memref<8x128xf32, #tpu.memory_space<vmem>>, vector<8x128xf32>,
    return
  }
}

</mosaic_0001>

<llo_original>
// kernel: newnet_forward.1
$region0: #{newnet_forward.1}
  #allocation0 [shape = 'u32[]', space=smem, size = 0x4, offset = 0x4, fixed_abs, tag = 'smem constant byte address 0x4 - core index']
  #allocation1 [shape = 'u32[144,128]{1,0:T(1,128)}', space=vmem, size = 0x12000, scoped, tag = 'internal scratch']
  %s0 = inlined_call_operand.vmem [shape: f32[8,128], index: 0, kind: input, shape index: {}]
  %s1 = inlined_call_operand.vmem [shape: f32[128,256], index: 1, kind: input, shape index: {}]
  %s2 = inlined_call_operand.vmem [shape: f32[1,256], index: 2, kind: input, shape index: {}]
  %s3 = inlined_call_operand.vmem [shape: f32[256,128], index: 3, kind: input, shape index: {}]
  %s4 = inlined_call_operand.vmem [shape: f32[1,128], index: 4, kind: input, shape index: {}]
  %s5 = inlined_call_operand.hbm [shape: f32[8,128], index: 5, kind: output, shape index: {}]
  %s6 = sld [smem:[#allocation0]]
  $region30: #{newnet_forward.1} parent=0
    _
  %s8 = ssub.s32 1, %s6
  %s9 = scalar_select 0, %s8, %s6
  $region1: #{newnet_forward.1} parent=0
    #allocation2 [shape = 'u8[4096]{0}', space=vmem, size = 0x1000, scoped, tag = 'output window, operand 0, single buffered']
    #allocation3 [shape = 's32[1]{0}', space=sflag, size = 0x4, scoped, tag = 'scoped memory for newnet_forward.1']
    %10 = vsyncpa [#allocation3], 0
    // Predicated region
    $region2: #{newnet_forward.1} parent=1 // pred_check
      _
    $region3: #{newnet_forward.1} parent=1 // pred_check_branch
      %12 = sbr.rel (0) target = $region5
    $region4: #{newnet_forward.1} parent=1 // pred_region
      _
    $region5: #{newnet_forward.1} parent=1 // pred_fallthru
      _
    // Predicated region
    $region6: #{newnet_forward.1} parent=1 // pred_check
      _
    $region7: #{newnet_forward.1} parent=1 // pred_check_branch
      %14 = sbr.rel (0) target = $region9
    $region8: #{newnet_forward.1} parent=1 // pred_region
      _
    $region9: #{newnet_forward.1} parent=1 // pred_fallthru
      _
    // Predicated region
    $region10: #{newnet_forward.1} parent=1 // pred_check
      _
    $region11: #{newnet_forward.1} parent=1 // pred_check_branch
      %16 = sbr.rel (0) target = $region13
    $region12: #{newnet_forward.1} parent=1 // pred_region
      _
    $region13: #{newnet_forward.1} parent=1 // pred_fallthru
      _
    // Predicated region
    $region14: #{newnet_forward.1} parent=1 // pred_check
      _
    $region15: #{newnet_forward.1} parent=1 // pred_check_branch
      %18 = sbr.rel (0) target = $region17
    $region16: #{newnet_forward.1} parent=1 // pred_region
      _
    $region17: #{newnet_forward.1} parent=1 // pred_fallthru
      _
    // Predicated region
    $region18: #{newnet_forward.1} parent=1 // pred_check
      _
    $region19: #{newnet_forward.1} parent=1 // pred_check_branch
      %20 = sbr.rel (0) target = $region21
    $region20: #{newnet_forward.1} parent=1 // pred_region
      _
    $region21: #{newnet_forward.1} parent=1 // pred_fallthru
      _
    %v21 = vld [vmem:[%s0] sm:$0xff]
    %v22 = vld [vmem:[%s1] sm:$0xff]
    %v23 = vld [vmem:[%s1 + $0x8] sm:$0xff]
    %v24 = vld [vmem:[%s1 + $0x10] sm:$0xff]
    %v25 = vld [vmem:[%s1 + $0x18] sm:$0xff]
    %v26 = vld [vmem:[%s1 + $0x20] sm:$0xff]
    %v27 = vld [vmem:[%s1 + $0x28] sm:$0xff]
    %v28 = vld [vmem:[%s1 + $0x30] sm:$0xff]
    %v29 = vld [vmem:[%s1 + $0x38] sm:$0xff]
    %v30 = vld [vmem:[%s1 + $0x40] sm:$0xff]
    %v31 = vld [vmem:[%s1 + $0x48] sm:$0xff]
    %v32 = vld [vmem:[%s1 + $0x50] sm:$0xff]
    %v33 = vld [vmem:[%s1 + $0x58] sm:$0xff]
    %v34 = vld [vmem:[%s1 + $0x60] sm:$0xff]
    %v35 = vld [vmem:[%s1 + $0x68] sm:$0xff]
    %v36 = vld [vmem:[%s1 + $0x70] sm:$0xff]
    %v37 = vld [vmem:[%s1 + $0x78] sm:$0xff]
    %v38 = vld [vmem:[%s1 + $0x80] sm:$0xff]
    %v39 = vld [vmem:[%s1 + $0x88] sm:$0xff]
    %v40 = vld [vmem:[%s1 + $0x90] sm:$0xff]
    %v41 = vld [vmem:[%s1 + $0x98] sm:$0xff]
    %v42 = vld [vmem:[%s1 + $0xa0] sm:$0xff]
    %v43 = vld [vmem:[%s1 + $0xa8] sm:$0xff]
    %v44 = vld [vmem:[%s1 + $0xb0] sm:$0xff]
    %v45 = vld [vmem:[%s1 + $0xb8] sm:$0xff]
    %v46 = vld [vmem:[%s1 + $0xc0] sm:$0xff]
    %v47 = vld [vmem:[%s1 + $0xc8] sm:$0xff]
    %v48 = vld [vmem:[%s1 + $0xd0] sm:$0xff]
    %v49 = vld [vmem:[%s1 + $0xd8] sm:$0xff]
    %v50 = vld [vmem:[%s1 + $0xe0] sm:$0xff]
    %v51 = vld [vmem:[%s1 + $0xe8] sm:$0xff]
    %v52 = vld [vmem:[%s1 + $0xf0] sm:$0xff]
    %v53 = vld [vmem:[%s1 + $0xf8] sm:$0xff]
    %v54 = vld [vmem:[%s2] sm:$0x3]
    %v56 = vlaneseq
    %v57 = vshrl.u32 %v56, 7
    %v58 = vsub.s32 0, %v57
    %v59 = vrot.slane %v54, %v58
    %v60 = vlaneseq
    %v61 = vshrl.u32 %v60, 7
    %v62 = vsub.s32 1, %v61
    %v63 = vrot.slane %v54, %v62
    %66 = vmatprep.subr.mxu0 %v23
    %67 = vmatpush1.msra.mxu0 %v22
    %68 = vmatprep.subr.mxu0 %v25
    %69 = vmatpush1.msra.mxu0 %v24
    %70 = vmatprep.subr.mxu0 %v27
    %71 = vmatpush1.msra.mxu0 %v26
    %72 = vmatprep.subr.mxu0 %v29
    %73 = vmatpush1.msra.mxu0 %v28
    %74 = vmatprep.subr.mxu0 %v31
    %75 = vmatpush1.msra.mxu0 %v30
    %76 = vmatprep.subr.mxu0 %v33
    %77 = vmatpush1.msra.mxu0 %v32
    %78 = vmatprep.subr.mxu0 %v35
    %79 = vmatpush1.msra.mxu0 %v34
    %80 = vmatprep.subr.mxu0 %v37
    %81 = vmatpush1.msra.mxu0 %v36
    %82 = vmatprep.subr.mxu0 %v39
    %83 = vmatpush1.msra.mxu0 %v38
    %84 = vmatprep.subr.mxu0 %v41
    %85 = vmatpush1.msra.mxu0 %v40
    %86 = vmatprep.subr.mxu0 %v43
    %87 = vmatpush1.msra.mxu0 %v42
    %88 = vmatprep.subr.mxu0 %v45
    %89 = vmatpush1.msra.mxu0 %v44
    %90 = vmatprep.subr.mxu0 %v47
    %91 = vmatpush1.msra.mxu0 %v46
    %92 = vmatprep.subr.mxu0 %v49
    %93 = vmatpush1.msra.mxu0 %v48
    %94 = vmatprep.subr.mxu0 %v51
    %95 = vmatpush1.msra.mxu0 %v50
    %96 = vmatprep.subr.mxu0 %v53
    %97 = vmatpush1.msra.mxu0 %v52
    %98 = vmatprep.subr.mxu0 0.0
    %99 = vmatpush1.msra.mxu0 0.0
    %100 = vmatprep.subr.mxu0 0.0
    %101 = vmatpush1.msra.mxu0 0.0
    %102 = vmatprep.subr.mxu0 0.0
    %103 = vmatpush1.msra.mxu0 0.0
    %104 = vmatprep.subr.mxu0 0.0
    %105 = vmatpush1.msra.mxu0 0.0
    %106 = vmatprep.subr.mxu0 0.0
    %107 = vmatpush1.msra.mxu0 0.0
    %108 = vmatprep.subr.mxu0 0.0
    %109 = vmatpush1.msra.mxu0 0.0
    %110 = vmatprep.subr.mxu0 0.0
    %111 = vmatpush1.msra.mxu0 0.0
    %112 = vmatprep.subr.mxu0 0.0
    %113 = vmatpush1.msra.mxu0 0.0
    %114 = vmatprep.subr.mxu0 0.0
    %115 = vmatpush1.msra.mxu0 0.0
    %116 = vmatprep.subr.mxu0 0.0
    %117 = vmatpush1.msra.mxu0 0.0
    %118 = vmatprep.subr.mxu0 0.0
    %119 = vmatpush1.msra.mxu0 0.0
    %120 = vmatprep.subr.mxu0 0.0
    %121 = vmatpush1.msra.mxu0 0.0
    %122 = vmatprep.subr.mxu0 0.0
    %123 = vmatpush1.msra.mxu0 0.0
    %124 = vmatprep.subr.mxu0 0.0
    %125 = vmatpush1.msra.mxu0 0.0
    %126 = vmatprep.subr.mxu0 0.0
    %127 = vmatpush1.msra.mxu0 0.0
    %128 = vmatprep.subr.mxu0 0.0
    %129 = vmatpush1.msra.mxu0 0.0
    %130 = vmatprep.mubr.f32.mxu0 0.0
    %131 = vmatmul.mubr.f32.gmra.mrb[0].mxu0 %v21
    %v132 = vpop.f32.mrb[0].mxu0
    %v133 = vadd.f32 %v59, %v132
    %v134 = vpop.f32.mrb[0].mxu0
    %v135 = vadd.f32 %v63, %v134
    %136 = vdwg.mxu0
    %v137 = vmax.f32 %v133, 0.0
    %v138 = vmax.f32 %v135, 0.0
    %v139 = vld [vmem:[%s3] sm:$0xff]
    %v140 = vld [vmem:[%s3 + $0x8] sm:$0xff]
    %v141 = vld [vmem:[%s3 + $0x10] sm:$0xff]
    %v142 = vld [vmem:[%s3 + $0x18] sm:$0xff]
    %v143 = vld [vmem:[%s3 + $0x20] sm:$0xff]
    %v144 = vld [vmem:[%s3 + $0x28] sm:$0xff]
    %v145 = vld [vmem:[%s3 + $0x30] sm:$0xff]
    %v146 = vld [vmem:[%s3 + $0x38] sm:$0xff]
    %v147 = vld [vmem:[%s3 + $0x40] sm:$0xff]
    %v148 = vld [vmem:[%s3 + $0x48] sm:$0xff]
    %v149 = vld [vmem:[%s3 + $0x50] sm:$0xff]
    %v150 = vld [vmem:[%s3 + $0x58] sm:$0xff]
    %v151 = vld [vmem:[%s3 + $0x60] sm:$0xff]
    %v152 = vld [vmem:[%s3 + $0x68] sm:$0xff]
    %v153 = vld [vmem:[%s3 + $0x70] sm:$0xff]
    %v154 = vld [vmem:[%s3 + $0x78] sm:$0xff]
    %v155 = vld [vmem:[%s3 + $0x80] sm:$0xff]
    %v156 = vld [vmem:[%s3 + $0x88] sm:$0xff]
    %v157 = vld [vmem:[%s3 + $0x90] sm:$0xff]
    %v158 = vld [vmem:[%s3 + $0x98] sm:$0xff]
    %v159 = vld [vmem:[%s3 + $0xa0] sm:$0xff]
    %v160 = vld [vmem:[%s3 + $0xa8] sm:$0xff]
    %v161 = vld [vmem:[%s3 + $0xb0] sm:$0xff]
    %v162 = vld [vmem:[%s3 + $0xb8] sm:$0xff]
    %v163 = vld [vmem:[%s3 + $0xc0] sm:$0xff]
    %v164 = vld [vmem:[%s3 + $0xc8] sm:$0xff]
    %v165 = vld [vmem:[%s3 + $0xd0] sm:$0xff]
    %v166 = vld [vmem:[%s3 + $0xd8] sm:$0xff]
    %v167 = vld [vmem:[%s3 + $0xe0] sm:$0xff]
    %v168 = vld [vmem:[%s3 + $0xe8] sm:$0xff]
    %v169 = vld [vmem:[%s3 + $0xf0] sm:$0xff]
    %v170 = vld [vmem:[%s3 + $0xf8] sm:$0xff]
    %v171 = vld [vmem:[%s4] sm:$0x1]
    %v173 = vlaneseq
    %v174 = vshrl.u32 %v173, 7
    %v175 = vsub.s32 0, %v174
    %v176 = vrot.slane %v171, %v175
    %178 = vmatprep.subr.mxu0 0.0
    %179 = vmatpush1.msra.mxu0 %v139
    %180 = vmatprep.subr.mxu0 0.0
    %181 = vmatpush1.msra.mxu0 %v140
    %182 = vmatprep.subr.mxu0 0.0
    %183 = vmatpush1.msra.mxu0 %v141
    %184 = vmatprep.subr.mxu0 0.0
    %185 = vmatpush1.msra.mxu0 %v142
    %186 = vmatprep.subr.mxu0 0.0
    %187 = vmatpush1.msra.mxu0 %v143
    %188 = vmatprep.subr.mxu0 0.0
    %189 = vmatpush1.msra.mxu0 %v144
    %190 = vmatprep.subr.mxu0 0.0
    %191 = vmatpush1.msra.mxu0 %v145
    %192 = vmatprep.subr.mxu0 0.0
    %193 = vmatpush1.msra.mxu0 %v146
    %194 = vmatprep.subr.mxu0 0.0
    %195 = vmatpush1.msra.mxu0 %v147
    %196 = vmatprep.subr.mxu0 0.0
    %197 = vmatpush1.msra.mxu0 %v148
    %198 = vmatprep.subr.mxu0 0.0
    %199 = vmatpush1.msra.mxu0 %v149
    %200 = vmatprep.subr.mxu0 0.0
    %201 = vmatpush1.msra.mxu0 %v150
    %202 = vmatprep.subr.mxu0 0.0
    %203 = vmatpush1.msra.mxu0 %v151
    %204 = vmatprep.subr.mxu0 0.0
    %205 = vmatpush1.msra.mxu0 %v152
    %206 = vmatprep.subr.mxu0 0.0
    %207 = vmatpush1.msra.mxu0 %v153
    %208 = vmatprep.subr.mxu0 0.0
    %209 = vmatpush1.msra.mxu0 %v154
    %210 = vmatprep.subr.mxu0 0.0
    %211 = vmatpush1.msra.mxu0 %v155
    %212 = vmatprep.subr.mxu0 0.0
    %213 = vmatpush1.msra.mxu0 %v156
    %214 = vmatprep.subr.mxu0 0.0
    %215 = vmatpush1.msra.mxu0 %v157
    %216 = vmatprep.subr.mxu0 0.0
    %217 = vmatpush1.msra.mxu0 %v158
    %218 = vmatprep.subr.mxu0 0.0
    %219 = vmatpush1.msra.mxu0 %v159
    %220 = vmatprep.subr.mxu0 0.0
    %221 = vmatpush1.msra.mxu0 %v160
    %222 = vmatprep.subr.mxu0 0.0
    %223 = vmatpush1.msra.mxu0 %v161
    %224 = vmatprep.subr.mxu0 0.0
    %225 = vmatpush1.msra.mxu0 %v162
    %226 = vmatprep.subr.mxu0 0.0
    %227 = vmatpush1.msra.mxu0 %v163
    %228 = vmatprep.subr.mxu0 0.0
    %229 = vmatpush1.msra.mxu0 %v164
    %230 = vmatprep.subr.mxu0 0.0
    %231 = vmatpush1.msra.mxu0 %v165
    %232 = vmatprep.subr.mxu0 0.0
    %233 = vmatpush1.msra.mxu0 %v166
    %234 = vmatprep.subr.mxu0 0.0
    %235 = vmatpush1.msra.mxu0 %v167
    %236 = vmatprep.subr.mxu0 0.0
    %237 = vmatpush1.msra.mxu0 %v168
    %238 = vmatprep.subr.mxu0 0.0
    %239 = vmatpush1.msra.mxu0 %v169
    %240 = vmatprep.subr.mxu0 0.0
    %241 = vmatpush1.msra.mxu0 %v170
    %242 = vmatprep.mubr.f32.mxu0 %v138
    %243 = vmatmul.mubr.f32.gmra.mrb[0].mxu0 %v137
    %v244 = vpop.f32.mrb[0].mxu0
    %v245 = vadd.f32 %v176, %v244
    %v246 = vpop.f32.mrb[0].mxu0
    %247 = vdwg.mxu0
    %248 = vst [vmem:[#allocation2] sm:$0xff] %v245
    // Predicated region
    $region22: #{newnet_forward.1} parent=1 // pred_check
      _
    $region23: #{newnet_forward.1} parent=1 // pred_check_branch
      %250 = sbr.rel (0) target = $region25
    $region24: #{newnet_forward.1} parent=1 // pred_region
      %s252 = ssub.s32 128, 128
      %253 = vsyncadd [#allocation3], %s252
      %s255 = sshll.u32 [#allocation2], 4
      %s256 = int_to_ptr.vmem [resolvable:$true] %s255
      %258 = dma.vmem_to_hbm [thread:$0]  %s256, 128, %s5, [#allocation3]
    $region25: #{newnet_forward.1} parent=1 // pred_fallthru
      _
    // Predicated region
    $region26: #{newnet_forward.1} parent=1 // pred_check
      _
    $region27: #{newnet_forward.1} parent=1 // pred_check_branch
      %260 = sbr.rel (0) target = $region29
    $region28: #{newnet_forward.1} parent=1 // pred_region
      %261 = dma.done [#allocation3], 128
    $region29: #{newnet_forward.1} parent=1 // pred_fallthru
      _
    %262 = vsyncpa [#allocation3], 1

</llo_original>
